<compile_context>
chip_gen: v7x
topology: tpu7x:2x2x1
jax: 0.10.0
libtpu: 0.0.40
codegen_flags: <defaults>
</compile_context>

<pallas_src>
import functools
import math

import jax
import jax.numpy as jnp
from jax import lax
from jax.experimental import pallas as pl
from jax.experimental.pallas import tpu as pltpu


def _round_up(v, m):
    return ((v + m - 1) // m) * m


def _lora_kernel(x_ref, wt_ref, b_ref, a_ref, bt_ref, o_ref, acc_ref, xa_ref,
                 *, scaling):
    k = pl.program_id(2)

    @pl.when(k == 0)
    def _():
        # Fold the frozen bias straight into the accumulator init.
        acc_ref[...] = jnp.broadcast_to(
            b_ref[...].astype(jnp.float32), acc_ref.shape)
        xa_ref[...] = jnp.zeros_like(xa_ref)

    x = x_ref[...]                                                  # (tm, tk)

    # Base path: accumulate x @ W.T over K tiles on the MXU.
    acc_ref[...] += jnp.dot(x, wt_ref[...],
                            preferred_element_type=jnp.float32)     # (tm, tn)

    # LoRA first stage: contract x (tm, tk) with lora_A (r, tk) along K.
    # lora_A kept lane-dense (last dim = K); contract its axis 1 with x axis 1.
    xa_ref[...] += lax.dot_general(
        x, a_ref[...], (((1,), (1,)), ((), ())),
        preferred_element_type=jnp.float32)                         # (tm, r)

    @pl.when(k == pl.num_programs(2) - 1)
    def _():
        # Scale the tiny (tm, r) intermediate (M*r VPU muls, not M*N).
        xa = xa_ref[...] * scaling
        lora = jnp.dot(xa, bt_ref[...],
                       preferred_element_type=jnp.float32)          # (tm, tn)
        o_ref[...] = (acc_ref[...] + lora).astype(o_ref.dtype)


def lora_forward(x, wt, bias, lora_A, lora_Bt, *, alpha=16.0, rank=8,
                 tm=256, tn=512, tk=512):
    """Fused LoRA linear forward.

    Args:
      x:       (..., K) activations (leading dims flattened like nn.Linear).
      wt:      (K, N) frozen base weight, pre-transposed once offline.
      bias:    (N,)   frozen base bias.
      lora_A:  (r, K) LoRA down-projection, natural lane-dense layout.
      lora_Bt: (r, N) LoRA up-projection transposed once (tiny: r*N elements).
    Returns:
      (..., N) output with the same dtype as x.
    """
    lead = x.shape[:-1]
    K = x.shape[-1]
    x2d = x.reshape(-1, K)
    M = x2d.shape[0]
    Kw, N = wt.shape
    assert Kw == K, "wt must be the (K, N) transposed weight"
    r = lora_A.shape[0]
    scaling = float(alpha) / float(rank)

    # Clamp tiles to the (padded) problem size so small shapes use one tile;
    # keep last dims multiples of 128 for lane-dense loads/stores.
    tm = min(tm, _round_up(M, 8))
    tn = min(tn, _round_up(N, 128))
    tk = min(tk, _round_up(K, 128))
    Mp, Np, Kp = _round_up(M, tm), _round_up(N, tn), _round_up(K, tk)

    # Zero-pad to tile multiples (zeros contribute nothing to the matmuls).
    if (Mp, Kp) != (M, K):
        x2d = jnp.pad(x2d, ((0, Mp - M), (0, Kp - K)))
    if (Kp, Np) != (K, N):
        # TODO(synk): pre-pad the frozen weight offline to avoid this per-call copy.
        wt = jnp.pad(wt, ((0, Kp - K), (0, Np - N)))
    if Np != N:
        bias = jnp.pad(bias, (0, Np - N))
        lora_Bt = jnp.pad(lora_Bt, ((0, 0), (0, Np - N)))
    if Kp != K:
        lora_A = jnp.pad(lora_A, ((0, 0), (0, Kp - K)))
    b2 = bias.reshape(1, Np)

    grid = (Mp // tm, Np // tn, Kp // tk)
    kernel = functools.partial(_lora_kernel, scaling=scaling)

    itemsize = x.dtype.itemsize
    cost = pl.CostEstimate(
        flops=2 * M * N * K + 2 * M * K * r + 2 * M * r * N,
        transcendentals=0,
        bytes_accessed=(M * K + K * N + N + r * K + r * N + M * N) * itemsize,
    )

    out = pl.pallas_call(
        kernel,
        out_shape=jax.ShapeDtypeStruct((Mp, Np), x.dtype),
        grid_spec=pltpu.PrefetchScalarGridSpec(
            num_scalar_prefetch=0,
            grid=grid,
            in_specs=[
                pl.BlockSpec((tm, tk), lambda i, j, k: (i, k)),   # x
                pl.BlockSpec((tk, tn), lambda i, j, k: (k, j)),   # W.T
                pl.BlockSpec((1, tn), lambda i, j, k: (0, j)),    # bias
                pl.BlockSpec((r, tk), lambda i, j, k: (0, k)),    # lora_A
                pl.BlockSpec((r, tn), lambda i, j, k: (0, j)),    # lora_B.T
            ],
            out_specs=pl.BlockSpec((tm, tn), lambda i, j, k: (i, j)),
            scratch_shapes=[
                pltpu.VMEM((tm, tn), jnp.float32),   # base-path accumulator
                pltpu.VMEM((tm, r), jnp.float32),    # xa = x @ A.T accumulator
            ],
        ),
        compiler_params=pltpu.CompilerParams(
            dimension_semantics=("parallel", "parallel", "arbitrary"),
            vmem_limit_bytes=32 * 1024 * 1024,
        ),
        cost_estimate=cost,
    )(x2d, wt, b2, lora_A, lora_Bt)

    out = out[:M, :N] if (Mp, Np) != (M, N) else out
    return out.reshape(lead + (N,))


if __name__ == "__main__":
    # Shapes consistent with nn.Linear(in_features=32, out_features=64), batch 8.
    M, K, N, RANK, ALPHA = 8, 32, 64, 8, 16

    key = jax.random.PRNGKey(0)
    kx, kw, kb, ka = jax.random.split(key, 4)

    x = jax.random.normal(kx, (M, K), dtype=jnp.float32)

    # Frozen base Linear params (deterministic synthetic init).
    weight = jax.random.normal(kw, (N, K), dtype=jnp.float32) * (1.0 / math.sqrt(K))
    bias = jax.random.normal(kb, (N,), dtype=jnp.float32) * 0.1

    # LoRA params, matching the module's __init__:
    #   lora_A: kaiming_uniform_(a=sqrt(5)) -> U(-1/sqrt(fan_in), 1/sqrt(fan_in))
    #   lora_B: zeros
    bound_a = 1.0 / math.sqrt(K)
    lora_A = jax.random.uniform(ka, (RANK, K), dtype=jnp.float32,
                                minval=-bound_a, maxval=bound_a)
    lora_B = jnp.zeros((N, RANK), dtype=jnp.float32)

    # One-time layout prep (done offline in practice: the base weight is frozen
    # under LoRA, and lora_B.T is tiny).
    wt = jnp.asarray(weight.T)      # (K, N)
    bt = jnp.asarray(lora_B.T)      # (r, N)

    scaling = ALPHA / RANK

    # Case 1: module init (lora_B == 0).
    out = jax.block_until_ready(
        lora_forward(x, wt, bias, lora_A, bt, alpha=ALPHA, rank=RANK))
    ref = (x @ weight.T + bias) + (x @ lora_A.T @ lora_B.T) * scaling
    assert jnp.allclose(out, ref, atol=1e-5, rtol=1e-5), "mismatch (B == 0 case)"

    # Case 2: nonzero B exercises the LoRA path.
    lora_B_nz = jax.random.normal(jax.random.PRNGKey(1), (N, RANK),
                                  dtype=jnp.float32) * 0.05
    out2 = jax.block_until_ready(
        lora_forward(x, wt, bias, lora_A, jnp.asarray(lora_B_nz.T),
                     alpha=ALPHA, rank=RANK))
    ref2 = (x @ weight.T + bias) + (x @ lora_A.T @ lora_B_nz.T) * scaling
    assert jnp.allclose(out2, ref2, atol=1e-5, rtol=1e-5), "mismatch (B != 0 case)"

    # Case 3: leading batch dims, like nn.Linear on a (B, T, K) tensor.
    xb = jax.random.normal(jax.random.PRNGKey(3), (2, 4, K), dtype=jnp.float32)
    out_b = jax.block_until_ready(
        lora_forward(xb, wt, bias, lora_A, jnp.asarray(lora_B_nz.T),
                     alpha=ALPHA, rank=RANK))
    ref_b = (xb @ weight.T + bias) + (xb @ lora_A.T @ lora_B_nz.T) * scaling
    assert out_b.shape == (2, 4, N)
    assert jnp.allclose(out_b, ref_b, atol=1e-5, rtol=1e-5), "mismatch (batched case)"

    # Case 4: a multi-tile shape (grid 2x2x2 with padding on N and K) to
    # exercise the accumulator init / epilogue and padding paths.
    M2, K2, N2 = 512, 768, 640
    k2 = jax.random.split(jax.random.PRNGKey(2), 5)
    x2 = jax.random.normal(k2[0], (M2, K2), dtype=jnp.float32)
    w2 = jax.random.normal(k2[1], (N2, K2), dtype=jnp.float32) * (1.0 / math.sqrt(K2))
    b2v = jax.random.normal(k2[2], (N2,), dtype=jnp.float32) * 0.1
    a2 = jax.random.uniform(k2[3], (RANK, K2), dtype=jnp.float32,
                            minval=-1.0 / math.sqrt(K2), maxval=1.0 / math.sqrt(K2))
    bB2 = jax.random.normal(k2[4], (N2, RANK), dtype=jnp.float32) * 0.05
    out3 = jax.block_until_ready(
        lora_forward(x2, jnp.asarray(w2.T), b2v, a2, jnp.asarray(bB2.T),
                     alpha=ALPHA, rank=RANK))
    ref3 = (x2 @ w2.T + b2v) + (x2 @ a2.T @ bB2.T) * scaling
    assert jnp.allclose(out3, ref3, atol=1e-3, rtol=1e-3), "mismatch (tiled case)"

    print("KERNEL_OK")
</pallas_src>

<mosaic_0001>
module attributes {stable_mosaic.version = 11 : i64} {
  func.func @_lora_kernel(%arg0: i32, %arg1: i32, %arg2: i32, %arg3: memref<8x128xf32, #tpu.memory_space<vmem>>, %arg4: memref<128x128xf32, #tpu.memory_space<vmem>>, %arg5: memref<1x128xf32, #tpu.memory_space<vmem>>, %arg6: memref<8x128xf32, #tpu.memory_space<vmem>>, %arg7: memref<8x128xf32, #tpu.memory_space<vmem>>, %arg8: memref<8x128xf32, #tpu.memory_space<vmem>>, %arg9: memref<8x128xf32, #tpu.memory_space<vmem>>, %arg10: memref<8x8xf32, #tpu.memory_space<vmem>>) attributes {dimension_semantics = [#tpu.dimension_semantics<parallel>, #tpu.dimension_semantics<parallel>, #tpu.dimension_semantics<arbitrary>], iteration_bounds = array<i64: 1, 1, 1>, scalar_prefetch = 0 : i64, scratch_operands = 2 : i64, tpu.core_type = #tpu.core_type<tc>, window_params = [{transform_indices = @transform_0, window_bounds = array<i64: 8, 128>}, {transform_indices = @transform_1, window_bounds = array<i64: 128, 128>}, {transform_indices = @transform_2, window_bounds = array<i64: 1, 128>}, {transform_indices = @transform_3, window_bounds = array<i64: 8, 128>}, {transform_indices = @transform_4, window_bounds = array<i64: 8, 128>}, {transform_indices = @transform_5, window_bounds = array<i64: 8, 128>}]} {
    %c0_i32 = arith.constant 0 : i32
    %0 = arith.cmpi eq, %arg2, %c0_i32 : i32
    %1 = arith.extui %0 : i1 to i32
    %c0_i32_0 = arith.constant 0 : i32
    %2 = arith.cmpi ne, %1, %c0_i32_0 : i32
    scf.if %2 {
      %c0_17 = arith.constant 0 : index
      %c0_18 = arith.constant 0 : index
      %17 = vector.load %arg5[%c0_17, %c0_18] : memref<1x128xf32, #tpu.memory_space<vmem>>, vector<1x128xf32>
      %18 = vector.shape_cast %17 : vector<1x128xf32> to vector<1x128xf32>
      %19 = vector.broadcast %18 : vector<1x128xf32> to vector<8x128xf32>
      %c0_19 = arith.constant 0 : index
      %c0_20 = arith.constant 0 : index
      %20 = vector.load %arg9[%c0_19, %c0_20] : memref<8x128xf32, #tpu.memory_space<vmem>>, vector<8x128xf32>
      tpu.vector_store %arg9[%c0_19, %c0_20], %19 {strides = array<i32>} : memref<8x128xf32, #tpu.memory_space<vmem>>, vector<8x128xf32>,
      %cst_21 = arith.constant 0.000000e+00 : f32
      %21 = vector.broadcast %cst_21 : f32 to vector<8x8xf32>
      %c0_22 = arith.constant 0 : index
      %c0_23 = arith.constant 0 : index
      %22 = vector.load %arg10[%c0_22, %c0_23] : memref<8x8xf32, #tpu.memory_space<vmem>>, vector<8x8xf32>
      tpu.vector_store %arg10[%c0_22, %c0_23], %21 {strides = array<i32>} : memref<8x8xf32, #tpu.memory_space<vmem>>, vector<8x8xf32>,
    } else {
    }
    %c0 = arith.constant 0 : index
    %c0_1 = arith.constant 0 : index
    %3 = vector.load %arg3[%c0, %c0_1] : memref<8x128xf32, #tpu.memory_space<vmem>>, vector<8x128xf32>
    %c0_2 = arith.constant 0 : index
    %c0_3 = arith.constant 0 : index
    %4 = vector.load %arg9[%c0_2, %c0_3] : memref<8x128xf32, #tpu.memory_space<vmem>>, vector<8x128xf32>
    %c0_4 = arith.constant 0 : index
    %c0_5 = arith.constant 0 : index
    %5 = vector.load %arg4[%c0_4, %c0_5] : memref<128x128xf32, #tpu.memory_space<vmem>>, vector<128x128xf32>
    %cst = arith.constant dense<0.000000e+00> : vector<8x128xf32>
    %6 = tpu.matmul %3, %5, %cst {dimension_numbers = #tpu.dot_dimension_numbers<[1], [0], [0], [1], [0, 0, 1, 1], [], []>} : vector<8x128xf32>, vector<128x128xf32>, vector<8x128xf32> -> vector<8x128xf32>
    %7 = arith.addf %4, %6 : vector<8x128xf32>
    %c0_6 = arith.constant 0 : index
    %c0_7 = arith.constant 0 : index
    %8 = vector.load %arg9[%c0_6, %c0_7] : memref<8x128xf32, #tpu.memory_space<vmem>>, vector<8x128xf32>
    tpu.vector_store %arg9[%c0_6, %c0_7], %7 {strides = array<i32>} : memref<8x128xf32, #tpu.memory_space<vmem>>, vector<8x128xf32>,
    %c0_8 = arith.constant 0 : index
    %c0_9 = arith.constant 0 : index
    %9 = vector.load %arg10[%c0_8, %c0_9] : memref<8x8xf32, #tpu.memory_space<vmem>>, vector<8x8xf32>
    %c0_10 = arith.constant 0 : index
    %c0_11 = arith.constant 0 : index
    %10 = vector.load %arg6[%c0_10, %c0_11] : memref<8x128xf32, #tpu.memory_space<vmem>>, vector<8x128xf32>
    %cst_12 = arith.constant dense<0.000000e+00> : vector<8x8xf32>
    %11 = tpu.matmul %3, %10, %cst_12 {dimension_numbers = #tpu.dot_dimension_numbers<[1], [1], [0], [0], [0, 0, 1, 0], [], []>} : vector<8x128xf32>, vector<8x128xf32>, vector<8x8xf32> -> vector<8x8xf32>
    %12 = arith.addf %9, %11 : vector<8x8xf32>
    %c0_13 = arith.constant 0 : index
    %c0_14 = arith.constant 0 : index
    %13 = vector.load %arg10[%c0_13, %c0_14] : memref<8x8xf32, #tpu.memory_space<vmem>>, vector<8x8xf32>
    tpu.vector_store %arg10[%c0_13, %c0_14], %12 {strides = array<i32>} : memref<8x8xf32, #tpu.memory_space<vmem>>, vector<8x8xf32>,
    %c0_i32_15 = arith.constant 0 : i32
    %14 = arith.cmpi eq, %arg2, %c0_i32_15 : i32
    %15 = arith.extui %14 : i1 to i32
    %c0_i32_16 = arith.constant 0 : i32
    %16 = arith.cmpi ne, %15, %c0_i32_16 : i32
    scf.if %16 {
      %c0_17 = arith.constant 0 : index
      %c0_18 = arith.constant 0 : index
      %17 = vector.load %arg10[%c0_17, %c0_18] : memref<8x8xf32, #tpu.memory_space<vmem>>, vector<8x8xf32>
      %cst_19 = arith.constant 2.000000e+00 : f32
      %18 = vector.broadcast %cst_19 : f32 to vector<8x8xf32>
      %19 = arith.mulf %17, %18 : vector<8x8xf32>
      %c0_20 = arith.constant 0 : index
      %c0_21 = arith.constant 0 : index
      %20 = vector.load %arg7[%c0_20, %c0_21] : memref<8x128xf32, #tpu.memory_space<vmem>>, vector<8x128xf32>
      %cst_22 = arith.constant dense<0.000000e+00> : vector<8x128xf32>
      %21 = tpu.matmul %19, %20, %cst_22 {dimension_numbers = #tpu.dot_dimension_numbers<[1], [0], [0], [1], [0, 0, 1, 1], [], []>} : vector<8x8xf32>, vector<8x128xf32>, vector<8x128xf32> -> vector<8x128xf32>
      %c0_23 = arith.constant 0 : index
      %c0_24 = arith.constant 0 : index
      %22 = vector.load %arg9[%c0_23, %c0_24] : memref<8x128xf32, #tpu.memory_space<vmem>>, vector<8x128xf32>
      %23 = arith.addf %22, %21 : vector<8x128xf32>
      %c0_25 = arith.constant 0 : index
      %c0_26 = arith.constant 0 : index
      %24 = vector.load %arg8[%c0_25, %c0_26] : memref<8x128xf32, #tpu.memory_space<vmem>>, vector<8x128xf32>
      tpu.vector_store %arg8[%c0_25, %c0_26], %23 {strides = array<i32>} : memref<8x128xf32, #tpu.memory_space<vmem>>, vector<8x128xf32>,
    } else {
    }
    return
  }
  func.func @transform_0(%arg0: i32, %arg1: i32, %arg2: i32) -> (i32, i32) {
    %c0_i32 = arith.constant 0 : i32
    return %arg0, %arg2 : i32, i32
  }
  func.func @transform_1(%arg0: i32, %arg1: i32, %arg2: i32) -> (i32, i32) {
    %c0_i32 = arith.constant 0 : i32
    return %arg2, %arg1 : i32, i32
  }
  func.func @transform_2(%arg0: i32, %arg1: i32, %arg2: i32) -> (i32, i32) {
    %c0_i32 = arith.constant 0 : i32
    %c0_i32_0 = arith.constant 0 : i32
    return %c0_i32, %arg1 : i32, i32
  }
  func.func @transform_3(%arg0: i32, %arg1: i32, %arg2: i32) -> (i32, i32) {
    %c0_i32 = arith.constant 0 : i32
    %c0_i32_0 = arith.constant 0 : i32
    return %c0_i32, %arg2 : i32, i32
  }
  func.func @transform_4(%arg0: i32, %arg1: i32, %arg2: i32) -> (i32, i32) {
    %c0_i32 = arith.constant 0 : i32
    %c0_i32_0 = arith.constant 0 : i32
    return %c0_i32, %arg1 : i32, i32
  }
  func.func @transform_5(%arg0: i32, %arg1: i32, %arg2: i32) -> (i32, i32) {
    %c0_i32 = arith.constant 0 : i32
    return %arg0, %arg1 : i32, i32
  }
}

</mosaic_0001>

<llo_original>
// kernel: tpu_custom_call.1
$region0: #{tpu_custom_call.1}
  #allocation0 [shape = 'u32[]', space=smem, size = 0x4, offset = 0x4, fixed_abs, tag = 'smem constant byte address 0x4 - core index']
  #allocation1 [shape = 'u32[144,128]{1,0:T(1,128)}', space=vmem, size = 0x12000, scoped, tag = 'internal scratch']
  #allocation2 [shape = 'f32[8,128]{1,0:T(8,128)}', space=vmem, size = 0x1000, scoped, tag = 'scratch operand']
  #allocation3 [shape = 'f32[8,8]{1,0:T(8,128)}', space=vmem, size = 0x1000, scoped, tag = 'scratch operand']
  %s0 = inlined_call_operand.hbm [shape: f32[8,128], index: 0, kind: input, shape index: {}]
  %s1 = inlined_call_operand.hbm [shape: f32[128,128], index: 1, kind: input, shape index: {}]
  %s2 = inlined_call_operand.vmem [shape: f32[1,128], index: 2, kind: input, shape index: {}]
  %s3 = inlined_call_operand.vmem [shape: f32[8,128], index: 3, kind: input, shape index: {}]
  %s4 = inlined_call_operand.hbm [shape: f32[8,128], index: 4, kind: input, shape index: {}]
  %s5 = inlined_call_operand.hbm [shape: f32[8,128], index: 5, kind: output, shape index: {}]
  %s6 = sld [smem:[#allocation0]]
  $region50: #{tpu_custom_call.1} parent=0
    _
  %s8 = ssub.s32 1, %s6
  %s9 = scalar_select 0, %s8, %s6
  $region1: #{tpu_custom_call.1} parent=0
    #allocation4 [shape = 'u8[4096]{0}', space=vmem, size = 0x1000, scoped, tag = 'input window, operand 0, single buffered']
    #allocation5 [shape = 's32[1]{0}', space=sflag, size = 0x4, scoped, tag = 'scoped memory for tpu_custom_call.1']
    #allocation6 [shape = 's32[1]{0}', space=sflag, size = 0x4, scoped, tag = 'scoped memory for tpu_custom_call.1']
    #allocation7 [shape = 'u8[65536]{0}', space=vmem, size = 0x10000, scoped, tag = 'input window, operand 1, single buffered']
    #allocation8 [shape = 's32[1]{0}', space=sflag, size = 0x4, scoped, tag = 'scoped memory for tpu_custom_call.1']
    #allocation9 [shape = 'u8[4096]{0}', space=vmem, size = 0x1000, scoped, tag = 'input window, operand 4, single buffered']
    #allocation10 [shape = 'u8[4096]{0}', space=vmem, size = 0x1000, scoped, tag = 'output window, operand 0, single buffered']
    %10 = vsyncpa [#allocation5], 0
    %11 = vsyncpa [#allocation8], 0
    %12 = vsyncpa [#allocation6], 0
    // Predicated region
    $region2: #{tpu_custom_call.1} parent=1 // pred_check
      _
    $region3: #{tpu_custom_call.1} parent=1 // pred_check_branch
      %14 = sbr.rel (0) target = $region5
    $region4: #{tpu_custom_call.1} parent=1 // pred_region
      %s16 = ssub.s32 128, 128
      %17 = vsyncadd [#allocation5], %s16
      %s19 = sshll.u32 [#allocation4], 4
      %s20 = int_to_ptr.vmem [resolvable:$true] %s19
      %22 = dma.hbm_to_vmem [thread:$0]  %s0, 128, %s20, [#allocation5]
    $region5: #{tpu_custom_call.1} parent=1 // pred_fallthru
      _
    // Predicated region
    $region6: #{tpu_custom_call.1} parent=1 // pred_check
      _
    $region7: #{tpu_custom_call.1} parent=1 // pred_check_branch
      %24 = sbr.rel (0) target = $region9
    $region8: #{tpu_custom_call.1} parent=1 // pred_region
      %s26 = ssub.s32 2048, 2048
      %27 = vsyncadd [#allocation8], %s26
      %s28 = sshll.u32 [#allocation7], 4
      %s29 = int_to_ptr.vmem [resolvable:$true] %s28
      %34 = dma.hbm_to_vmem [thread:$0]  %s1, 2048, %s29, [#allocation8], 128, 128, 8
    $region9: #{tpu_custom_call.1} parent=1 // pred_fallthru
      _
    // Predicated region
    $region10: #{tpu_custom_call.1} parent=1 // pred_check
      _
    $region11: #{tpu_custom_call.1} parent=1 // pred_check_branch
      %36 = sbr.rel (0) target = $region13
    $region12: #{tpu_custom_call.1} parent=1 // pred_region
      _
    $region13: #{tpu_custom_call.1} parent=1 // pred_fallthru
      _
    // Predicated region
    $region14: #{tpu_custom_call.1} parent=1 // pred_check
      _
    $region15: #{tpu_custom_call.1} parent=1 // pred_check_branch
      %38 = sbr.rel (0) target = $region17
    $region16: #{tpu_custom_call.1} parent=1 // pred_region
      _
    $region17: #{tpu_custom_call.1} parent=1 // pred_fallthru
      _
    // Predicated region
    $region18: #{tpu_custom_call.1} parent=1 // pred_check
      _
    $region19: #{tpu_custom_call.1} parent=1 // pred_check_branch
      %40 = sbr.rel (0) target = $region21
    $region20: #{tpu_custom_call.1} parent=1 // pred_region
      %s42 = ssub.s32 128, 128
      %43 = vsyncadd [#allocation8], %s42
      %s45 = sshll.u32 [#allocation9], 4
      %s46 = int_to_ptr.vmem [resolvable:$true] %s45
      %48 = dma.hbm_to_vmem [thread:$0]  %s4, 128, %s46, [#allocation8]
    $region21: #{tpu_custom_call.1} parent=1 // pred_fallthru
      _
    // Predicated region
    $region22: #{tpu_custom_call.1} parent=1 // pred_check
      _
    $region23: #{tpu_custom_call.1} parent=1 // pred_check_branch
      %50 = sbr.rel (0) target = $region25
    $region24: #{tpu_custom_call.1} parent=1 // pred_region
      %51 = dma.done [#allocation5], 128
    $region25: #{tpu_custom_call.1} parent=1 // pred_fallthru
      _
    // Predicated region
    $region26: #{tpu_custom_call.1} parent=1 // pred_check
      _
    $region27: #{tpu_custom_call.1} parent=1 // pred_check_branch
      %53 = sbr.rel (0) target = $region29
    $region28: #{tpu_custom_call.1} parent=1 // pred_region
      %54 = dma.done [#allocation8], 2048
    $region29: #{tpu_custom_call.1} parent=1 // pred_fallthru
      _
    // Predicated region
    $region30: #{tpu_custom_call.1} parent=1 // pred_check
      _
    $region31: #{tpu_custom_call.1} parent=1 // pred_check_branch
      %56 = sbr.rel (0) target = $region33
    $region32: #{tpu_custom_call.1} parent=1 // pred_region
      %57 = dma.done [#allocation8], 128
    $region33: #{tpu_custom_call.1} parent=1 // pred_fallthru
      _
    %p58 = scmp.eq.s32.totalorder 0, 0
    // Predicated region
    $region34: #{tpu_custom_call.1} parent=1 // pred_check
      %p59 = pneg %p58
    $region35: #{tpu_custom_call.1} parent=1 // pred_check_branch
      %61 = sbr.rel (%p59) target = $region37
    $region36: #{tpu_custom_call.1} parent=1 // pred_region
      %v62 = vld [vmem:[%s2] sm:$0x1]
      %v64 = vlaneseq
      %v65 = vshrl.u32 %v64, 7
      %v66 = vsub.s32 0, %v65
      %v67 = vrot.slane %v62, %v66
      %69 = vst [vmem:[#allocation2] sm:$0xff] %v67
      %vm70 = vcmask 64512
      %71 = vst.msk [vmem:[#allocation3] sm:$0xff] %vm70, 0.0
    $region37: #{tpu_custom_call.1} parent=1 // pred_fallthru
      _
    %v72 = vld [vmem:[#allocation4] sm:$0xff]
    %v73 = vld [vmem:[#allocation2] sm:$0xff]
    %v74 = vld [vmem:[#allocation7] sm:$0xff]
    %v75 = vld [vmem:[#allocation7 + $0x8] sm:$0xff]
    %v76 = vld [vmem:[#allocation7 + $0x10] sm:$0xff]
    %v77 = vld [vmem:[#allocation7 + $0x18] sm:$0xff]
    %v78 = vld [vmem:[#allocation7 + $0x20] sm:$0xff]
    %v79 = vld [vmem:[#allocation7 + $0x28] sm:$0xff]
    %v80 = vld [vmem:[#allocation7 + $0x30] sm:$0xff]
    %v81 = vld [vmem:[#allocation7 + $0x38] sm:$0xff]
    %v82 = vld [vmem:[#allocation7 + $0x40] sm:$0xff]
    %v83 = vld [vmem:[#allocation7 + $0x48] sm:$0xff]
    %v84 = vld [vmem:[#allocation7 + $0x50] sm:$0xff]
    %v85 = vld [vmem:[#allocation7 + $0x58] sm:$0xff]
    %v86 = vld [vmem:[#allocation7 + $0x60] sm:$0xff]
    %v87 = vld [vmem:[#allocation7 + $0x68] sm:$0xff]
    %v88 = vld [vmem:[#allocation7 + $0x70] sm:$0xff]
    %v89 = vld [vmem:[#allocation7 + $0x78] sm:$0xff]
    %90 = vmatprep.subr.mxu0 0.0
    %91 = vmatpush1.msra.mxu0 %v74
    %92 = vmatprep.subr.mxu0 0.0
    %93 = vmatpush1.msra.mxu0 %v75
    %94 = vmatprep.subr.mxu0 0.0
    %95 = vmatpush1.msra.mxu0 %v76
    %96 = vmatprep.subr.mxu0 0.0
    %97 = vmatpush1.msra.mxu0 %v77
    %98 = vmatprep.subr.mxu0 0.0
    %99 = vmatpush1.msra.mxu0 %v78
    %100 = vmatprep.subr.mxu0 0.0
    %101 = vmatpush1.msra.mxu0 %v79
    %102 = vmatprep.subr.mxu0 0.0
    %103 = vmatpush1.msra.mxu0 %v80
    %104 = vmatprep.subr.mxu0 0.0
    %105 = vmatpush1.msra.mxu0 %v81
    %106 = vmatprep.subr.mxu0 0.0
    %107 = vmatpush1.msra.mxu0 %v82
    %108 = vmatprep.subr.mxu0 0.0
    %109 = vmatpush1.msra.mxu0 %v83
    %110 = vmatprep.subr.mxu0 0.0
    %111 = vmatpush1.msra.mxu0 %v84
    %112 = vmatprep.subr.mxu0 0.0
    %113 = vmatpush1.msra.mxu0 %v85
    %114 = vmatprep.subr.mxu0 0.0
    %115 = vmatpush1.msra.mxu0 %v86
    %116 = vmatprep.subr.mxu0 0.0
    %117 = vmatpush1.msra.mxu0 %v87
    %118 = vmatprep.subr.mxu0 0.0
    %119 = vmatpush1.msra.mxu0 %v88
    %120 = vmatprep.subr.mxu0 0.0
    %121 = vmatpush1.msra.mxu0 %v89
    %122 = vmatprep.subr.mxu0 0.0
    %123 = vmatpush1.msra.mxu0 0.0
    %124 = vmatprep.subr.mxu0 0.0
    %125 = vmatpush1.msra.mxu0 0.0
    %126 = vmatprep.subr.mxu0 0.0
    %127 = vmatpush1.msra.mxu0 0.0
    %128 = vmatprep.subr.mxu0 0.0
    %129 = vmatpush1.msra.mxu0 0.0
    %130 = vmatprep.subr.mxu0 0.0
    %131 = vmatpush1.msra.mxu0 0.0
    %132 = vmatprep.subr.mxu0 0.0
    %133 = vmatpush1.msra.mxu0 0.0
    %134 = vmatprep.subr.mxu0 0.0
    %135 = vmatpush1.msra.mxu0 0.0
    %136 = vmatprep.subr.mxu0 0.0
    %137 = vmatpush1.msra.mxu0 0.0
    %138 = vmatprep.subr.mxu0 0.0
    %139 = vmatpush1.msra.mxu0 0.0
    %140 = vmatprep.subr.mxu0 0.0
    %141 = vmatpush1.msra.mxu0 0.0
    %142 = vmatprep.subr.mxu0 0.0
    %143 = vmatpush1.msra.mxu0 0.0
    %144 = vmatprep.subr.mxu0 0.0
    %145 = vmatpush1.msra.mxu0 0.0
    %146 = vmatprep.subr.mxu0 0.0
    %147 = vmatpush1.msra.mxu0 0.0
    %148 = vmatprep.subr.mxu0 0.0
    %149 = vmatpush1.msra.mxu0 0.0
    %150 = vmatprep.subr.mxu0 0.0
    %151 = vmatpush1.msra.mxu0 0.0
    %152 = vmatprep.subr.mxu0 0.0
    %153 = vmatpush1.msra.mxu0 0.0
    %154 = vmatprep.mubr.f32.mxu0 0.0
    %155 = vmatmul.mubr.f32.gmra.mrb[0].mxu0 %v72
    %v156 = vpop.f32.mrb[0].mxu0
    %v157 = vadd.f32 0.0, %v156
    %v158 = vpop.f32.mrb[0].mxu0
    %159 = vdwg.mxu0
    %v160 = vadd.f32 %v73, %v157
    %161 = vst [vmem:[#allocation2] sm:$0xff] %v160
    %v162 = vld [vmem:[#allocation3] sm:$0xff]
    %v163 = vld [vmem:[%s3] sm:$0xff]
    %164 = vmatprep.subr.mxu0 0.0
    %165 = vmatpush1.xpose.msra.mxu0 %v163
    %166 = vmatprep.subr.mxu0 0.0
    %167 = vmatpush1.xpose.msra.mxu0 0.0
    %168 = vmatprep.subr.mxu0 0.0
    %169 = vmatpush1.xpose.msra.mxu0 0.0
    %170 = vmatprep.subr.mxu0 0.0
    %171 = vmatpush1.xpose.msra.mxu0 0.0
    %172 = vmatprep.subr.mxu0 0.0
    %173 = vmatpush1.xpose.msra.mxu0 0.0
    %174 = vmatprep.subr.mxu0 0.0
    %175 = vmatpush1.xpose.msra.mxu0 0.0
    %176 = vmatprep.subr.mxu0 0.0
    %177 = vmatpush1.xpose.msra.mxu0 0.0
    %178 = vmatprep.subr.mxu0 0.0
    %179 = vmatpush1.xpose.msra.mxu0 0.0
    %180 = vmatprep.subr.mxu0 0.0
    %181 = vmatpush1.xpose.msra.mxu0 0.0
    %182 = vmatprep.subr.mxu0 0.0
    %183 = vmatpush1.xpose.msra.mxu0 0.0
    %184 = vmatprep.subr.mxu0 0.0
    %185 = vmatpush1.xpose.msra.mxu0 0.0
    %186 = vmatprep.subr.mxu0 0.0
    %187 = vmatpush1.xpose.msra.mxu0 0.0
    %188 = vmatprep.subr.mxu0 0.0
    %189 = vmatpush1.xpose.msra.mxu0 0.0
    %190 = vmatprep.subr.mxu0 0.0
    %191 = vmatpush1.xpose.msra.mxu0 0.0
    %192 = vmatprep.subr.mxu0 0.0
    %193 = vmatpush1.xpose.msra.mxu0 0.0
    %194 = vmatprep.subr.mxu0 0.0
    %195 = vmatpush1.xpose.msra.mxu0 0.0
    %196 = vmatprep.subr.mxu0 0.0
    %197 = vmatpush1.xpose.msra.mxu0 0.0
    %198 = vmatprep.subr.mxu0 0.0
    %199 = vmatpush1.xpose.msra.mxu0 0.0
    %200 = vmatprep.subr.mxu0 0.0
    %201 = vmatpush1.xpose.msra.mxu0 0.0
    %202 = vmatprep.subr.mxu0 0.0
    %203 = vmatpush1.xpose.msra.mxu0 0.0
    %204 = vmatprep.subr.mxu0 0.0
    %205 = vmatpush1.xpose.msra.mxu0 0.0
    %206 = vmatprep.subr.mxu0 0.0
    %207 = vmatpush1.xpose.msra.mxu0 0.0
    %208 = vmatprep.subr.mxu0 0.0
    %209 = vmatpush1.xpose.msra.mxu0 0.0
    %210 = vmatprep.subr.mxu0 0.0
    %211 = vmatpush1.xpose.msra.mxu0 0.0
    %212 = vmatprep.subr.mxu0 0.0
    %213 = vmatpush1.xpose.msra.mxu0 0.0
    %214 = vmatprep.subr.mxu0 0.0
    %215 = vmatpush1.xpose.msra.mxu0 0.0
    %216 = vmatprep.subr.mxu0 0.0
    %217 = vmatpush1.xpose.msra.mxu0 0.0
    %218 = vmatprep.subr.mxu0 0.0
    %219 = vmatpush1.xpose.msra.mxu0 0.0
    %220 = vmatprep.subr.mxu0 0.0
    %221 = vmatpush1.xpose.msra.mxu0 0.0
    %222 = vmatprep.subr.mxu0 0.0
    %223 = vmatpush1.xpose.msra.mxu0 0.0
    %224 = vmatprep.subr.mxu0 0.0
    %225 = vmatpush1.xpose.msra.mxu0 0.0
    %226 = vmatprep.subr.mxu0 0.0
    %227 = vmatpush1.xpose.msra.mxu0 0.0
    %228 = vmatprep.mubr.f32.mxu0 0.0
    %229 = vmatmul.mubr.f32.gmra.mrb[0].mxu0 %v72
    %v230 = vpop.f32.mrb[0].mxu0
    %v231 = vadd.f32 0.0, %v230
    %v232 = vpop.f32.mrb[0].mxu0
    %233 = vdwg.mxu0
    %v234 = vadd.f32 %v162, %v231
    %vm235 = vcmask 64512
    %236 = vst.msk [vmem:[#allocation3] sm:$0xff] %vm235, %v234
    // Predicated region
    $region38: #{tpu_custom_call.1} parent=1 // pred_check
      %p237 = pneg %p58
    $region39: #{tpu_custom_call.1} parent=1 // pred_check_branch
      %239 = sbr.rel (%p237) target = $region41
    $region40: #{tpu_custom_call.1} parent=1 // pred_region
      %v240 = vld [vmem:[#allocation3] sm:$0xff]
      %v241 = vmul.f32 %v240, 2.0
      %v242 = vld [vmem:[#allocation9] sm:$0xff]
      %v244 = vsel %vm235, %v241, 0
      %246 = vmatprep.subr.mxu0 0.0
      %247 = vmatpush1.msra.mxu0 %v242
      %248 = vmatprep.subr.mxu0 0.0
      %249 = vmatpush1.msra.mxu0 0.0
      %250 = vmatprep.subr.mxu0 0.0
      %251 = vmatpush1.msra.mxu0 0.0
      %252 = vmatprep.subr.mxu0 0.0
      %253 = vmatpush1.msra.mxu0 0.0
      %254 = vmatprep.subr.mxu0 0.0
      %255 = vmatpush1.msra.mxu0 0.0
      %256 = vmatprep.subr.mxu0 0.0
      %257 = vmatpush1.msra.mxu0 0.0
      %258 = vmatprep.subr.mxu0 0.0
      %259 = vmatpush1.msra.mxu0 0.0
      %260 = vmatprep.subr.mxu0 0.0
      %261 = vmatpush1.msra.mxu0 0.0
      %262 = vmatprep.subr.mxu0 0.0
      %263 = vmatpush1.msra.mxu0 0.0
      %264 = vmatprep.subr.mxu0 0.0
      %265 = vmatpush1.msra.mxu0 0.0
      %266 = vmatprep.subr.mxu0 0.0
      %267 = vmatpush1.msra.mxu0 0.0
      %268 = vmatprep.subr.mxu0 0.0
      %269 = vmatpush1.msra.mxu0 0.0
      %270 = vmatprep.subr.mxu0 0.0
      %271 = vmatpush1.msra.mxu0 0.0
      %272 = vmatprep.subr.mxu0 0.0
      %273 = vmatpush1.msra.mxu0 0.0
      %274 = vmatprep.subr.mxu0 0.0
      %275 = vmatpush1.msra.mxu0 0.0
      %276 = vmatprep.subr.mxu0 0.0
      %277 = vmatpush1.msra.mxu0 0.0
      %278 = vmatprep.subr.mxu0 0.0
      %279 = vmatpush1.msra.mxu0 0.0
      %280 = vmatprep.subr.mxu0 0.0
      %281 = vmatpush1.msra.mxu0 0.0
      %282 = vmatprep.subr.mxu0 0.0
      %283 = vmatpush1.msra.mxu0 0.0
      %284 = vmatprep.subr.mxu0 0.0
      %285 = vmatpush1.msra.mxu0 0.0
      %286 = vmatprep.subr.mxu0 0.0
      %287 = vmatpush1.msra.mxu0 0.0
      %288 = vmatprep.subr.mxu0 0.0
      %289 = vmatpush1.msra.mxu0 0.0
      %290 = vmatprep.subr.mxu0 0.0
      %291 = vmatpush1.msra.mxu0 0.0
      %292 = vmatprep.subr.mxu0 0.0
      %293 = vmatpush1.msra.mxu0 0.0
      %294 = vmatprep.subr.mxu0 0.0
      %295 = vmatpush1.msra.mxu0 0.0
      %296 = vmatprep.subr.mxu0 0.0
      %297 = vmatpush1.msra.mxu0 0.0
      %298 = vmatprep.subr.mxu0 0.0
      %299 = vmatpush1.msra.mxu0 0.0
      %300 = vmatprep.subr.mxu0 0.0
      %301 = vmatpush1.msra.mxu0 0.0
      %302 = vmatprep.subr.mxu0 0.0
      %303 = vmatpush1.msra.mxu0 0.0
      %304 = vmatprep.subr.mxu0 0.0
      %305 = vmatpush1.msra.mxu0 0.0
      %306 = vmatprep.subr.mxu0 0.0
      %307 = vmatpush1.msra.mxu0 0.0
      %308 = vmatprep.subr.mxu0 0.0
      %309 = vmatpush1.msra.mxu0 0.0
      %310 = vmatprep.mubr.f32.mxu0 0.0
      %311 = vmatmul.mubr.f32.gmra.mrb[0].mxu0 %v244
      %v312 = vpop.f32.mrb[0].mxu0
      %v313 = vadd.f32 0.0, %v312
      %v314 = vpop.f32.mrb[0].mxu0
      %315 = vdwg.mxu0
      %v316 = vld [vmem:[#allocation2] sm:$0xff]
      %v317 = vadd.f32 %v316, %v313
      %318 = vst [vmem:[#allocation10] sm:$0xff] %v317
    $region41: #{tpu_custom_call.1} parent=1 // pred_fallthru
      _
    // Predicated region
    $region42: #{tpu_custom_call.1} parent=1 // pred_check
      _
    $region43: #{tpu_custom_call.1} parent=1 // pred_check_branch
      %320 = sbr.rel (0) target = $region45
    $region44: #{tpu_custom_call.1} parent=1 // pred_region
      %s322 = ssub.s32 128, 128
      %323 = vsyncadd [#allocation6], %s322
      %s325 = sshll.u32 [#allocation10], 4
      %s326 = int_to_ptr.vmem [resolvable:$true] %s325
      %328 = dma.vmem_to_hbm [thread:$0]  %s326, 128, %s5, [#allocation6]
    $region45: #{tpu_custom_call.1} parent=1 // pred_fallthru
      _
    // Predicated region
    $region46: #{tpu_custom_call.1} parent=1 // pred_check
      _
    $region47: #{tpu_custom_call.1} parent=1 // pred_check_branch
      %330 = sbr.rel (0) target = $region49
    $region48: #{tpu_custom_call.1} parent=1 // pred_region
      %331 = dma.done [#allocation6], 128
    $region49: #{tpu_custom_call.1} parent=1 // pred_fallthru
      _
    %332 = vsyncpa [#allocation5], 1
    %333 = vsyncpa [#allocation8], 1
    %334 = vsyncpa [#allocation6], 1

</llo_original>
